<compile_context>
chip_gen: v7x
topology: tpu7x:2x2x1
jax: 0.10.0
libtpu: 0.0.40
codegen_flags: <defaults>
</compile_context>

<pallas_src>
import jax
import jax.numpy as jnp
from jax.experimental import pallas as pl
from jax.experimental.pallas import tpu as pltpu


# --------------------------------------------------------------------------
# Kernel
# --------------------------------------------------------------------------
def mlp_kernel(x_ref, w1_ref, w2_ref, o_ref, acc_ref):
    k = pl.program_id(1)
    last = pl.num_programs(1) - 1

    @pl.when(k == 0)
    def _():
        acc_ref[...] = jnp.zeros_like(acc_ref)

    # fc1 tile: cast the f32 x tile to bf16 in-kernel, MXU matmul with f32
    # accumulation.  NOTE: when M % tm != 0 the tail x block contains garbage
    # rows; this is safe only because both matmuls are row-independent and
    # Pallas masks the out-of-bounds part of the output store.
    h = jnp.dot(x_ref[...].astype(w1_ref.dtype), w1_ref[...],
                preferred_element_type=jnp.float32)
    # ReLU in bf16 (cast-then-relu == relu-then-cast under round-to-nearest);
    # halves VPU elementwise work on chips with bf16 VALUs (v6e/v7x).
    h = jnp.maximum(h.astype(w2_ref.dtype), 0.0)

    # fc2 partial product for this hidden-dim tile (f32).
    partial = jnp.dot(h, w2_ref[...], preferred_element_type=jnp.float32)

    @pl.when(k != last)
    def _():
        acc_ref[...] += partial

    @pl.when(k == last)
    def _():
        # Fuse final partial product with the writeback: saves one full f32
        # read-modify-write of the (tm, O_pad) accumulator per output tile.
        o_ref[...] = (acc_ref[...] + partial).astype(o_ref.dtype)


# --------------------------------------------------------------------------
# Sizing helpers
# --------------------------------------------------------------------------
def _round_up(x, m):
    return ((x + m - 1) // m) * m


def _vmem_budget():
    """Return (tile_budget_bytes, vmem_limit_bytes, is_small_vmem_chip)."""
    try:
        cap = int(pltpu.get_tpu_info().vmem_capacity_bytes)
    except Exception:
        cap = 64 << 20  # conservative (v7x-sized) fallback
    small = cap <= (64 << 20)  # v7x: 64 MiB per TensorCore
    if small:
        # Explicit headroom for Mosaic internal scratch on the small chip.
        limit = min(cap - (8 << 20), 56 << 20)
    else:
        limit = min(cap * 3 // 4, 100 << 20)
    limit = max(limit, 16 << 20)
    return int(limit * 0.85), int(limit), small


def _vmem_estimate(tm, th, D, O_pad, x_bytes, w_bytes, out_bytes):
    return (2 * tm * D * x_bytes          # f32 x tile (double-buffered)
            + 2 * D * th * w_bytes        # fc1 weight tile
            + 2 * th * O_pad * w_bytes    # fc2 weight tile
            + 2 * tm * O_pad * out_bytes  # output tile
            + tm * O_pad * 4              # f32 accumulator scratch
            + tm * th * 6                 # h intermediate (f32 + bf16)
            + tm * O_pad * 4)             # f32 partial product


def _select_tiles(M, D, H_pad, O_pad, x_bytes, w_bytes, out_bytes,
                  budget, small_vmem):
    # Weights are re-streamed from HBM once per M tile, so prefer the largest
    # tm that fits (arithmetic intensity ~ tm FLOP / weight byte).  Cap tm at
    # 512 on 64-MiB-VMEM chips (v7x); 1024 otherwise (v5e/v6e).
    tm_max = 512 if small_vmem else 1024
    tm_cands = [t for t in (1024, 768, 512, 384, 256, 128, 64, 32, 16, 8)
                if t <= tm_max and t <= _round_up(M, 8)]
    if not tm_cands:
        tm_cands = [_round_up(M, 8)]
    # th must divide the (padded) hidden dim; H_pad is a multiple of 128 so
    # th=128 always qualifies.  Prefer large th: fewer k steps => fewer
    # accumulator RMWs and per-step pipeline overheads.
    th_cands = [t for t in (1024, 512, 256, 128)
                if t <= H_pad and H_pad % t == 0]
    if not th_cands:
        th_cands = [H_pad]

    for tm in tm_cands:
        for th in th_cands:
            if _vmem_estimate(tm, th, D, O_pad,
                              x_bytes, w_bytes, out_bytes) <= budget:
                if small_vmem:
                    # 2 TensorCores: make sure the "parallel" M axis has at
                    # least 2 programs, otherwise one core idles.
                    while tm > 8 and M > 8 and pl.cdiv(M, tm) < 2:
                        tm = max(8, _round_up(tm // 2, 8))
                return tm, th
    # Smallest tiles as a last resort; if even this exceeds the budget the
    # compile-time VMEM check (vmem_limit_bytes) will surface it loudly.
    return tm_cands[-1], th_cands[-1]


# --------------------------------------------------------------------------
# One-time parameter prep (hoisted out of the per-call path)
# --------------------------------------------------------------------------
def prep_mlp_params(w1, w2, *, compute_dtype=jnp.bfloat16):
    """w1: (hidden_dim, in_dim), w2: (out_dim, hidden_dim)  (PyTorch layout).

    Returns pre-transposed / pre-cast / pre-padded weights plus metadata so
    the per-call path does no extra HBM passes over the weights.
    """
    H, D = w1.shape
    O, H2 = w2.shape
    assert H == H2, "shape mismatch between fc1 / fc2"

    # Pad hidden dim so large H tiles divide it (exact: zero hidden units).
    H_pad = 128 if H <= 128 else _round_up(H, 256)
    # Lane-dense output, padded up to >=256 so fc2 fills a 256-wide MXU
    # (exact: zero output columns, sliced off in the wrapper).
    O_pad = max(_round_up(O, 128), 256)

    w1_t = jnp.zeros((D, H_pad), compute_dtype).at[:, :H].set(
        w1.T.astype(compute_dtype))
    w2_t = jnp.zeros((H_pad, O_pad), compute_dtype).at[:H, :O].set(
        w2.T.astype(compute_dtype))
    return {"w1_t": w1_t, "w2_t": w2_t,
            "in_dim": D, "hidden_dim": H, "out_dim": O}


# --------------------------------------------------------------------------
# Forward
# --------------------------------------------------------------------------
def mlp_forward(x, params, *, interpret=False):
    """x: (M, in_dim) f32/bf16 -> (M, out_dim) in x.dtype."""
    w1_t, w2_t = params["w1_t"], params["w2_t"]
    O = params["out_dim"]
    M, D = x.shape
    assert D == params["in_dim"], "x / fc1 shape mismatch"
    D2, H_pad = w1_t.shape
    H_pad2, O_pad = w2_t.shape
    assert D == D2 and H_pad == H_pad2

    out_dtype = x.dtype
    x_bytes = jnp.dtype(x.dtype).itemsize
    w_bytes = jnp.dtype(w1_t.dtype).itemsize
    out_bytes = jnp.dtype(out_dtype).itemsize

    budget, vmem_limit, small_vmem = _vmem_budget()
    tm, th = _select_tiles(M, D, H_pad, O_pad,
                           x_bytes, w_bytes, out_bytes, budget, small_vmem)

    grid = (pl.cdiv(M, tm), H_pad // th)

    cost = pl.CostEstimate(
        flops=2 * M * D * H_pad + 2 * M * H_pad * O_pad,
        transcendentals=0,
        # Weights are re-streamed once per M row tile.
        bytes_accessed=(M * D * x_bytes
                        + pl.cdiv(M, tm) * (D * H_pad + H_pad * O_pad) * w_bytes
                        + M * O_pad * out_bytes),
    )

    out = pl.pallas_call(
        mlp_kernel,
        out_shape=jax.ShapeDtypeStruct((M, O_pad), out_dtype),
        grid_spec=pltpu.PrefetchScalarGridSpec(
            num_scalar_prefetch=0,
            grid=grid,
            in_specs=[
                pl.BlockSpec((tm, D), lambda i, k: (i, 0)),      # x row tile
                pl.BlockSpec((D, th), lambda i, k: (0, k)),      # fc1 weights
                pl.BlockSpec((th, O_pad), lambda i, k: (k, 0)),  # fc2 weights
            ],
            out_specs=pl.BlockSpec((tm, O_pad), lambda i, k: (i, 0)),
            scratch_shapes=[pltpu.VMEM((tm, O_pad), jnp.float32)],
        ),
        compiler_params=pltpu.CompilerParams(
            dimension_semantics=("parallel", "arbitrary"),
            vmem_limit_bytes=vmem_limit,
        ),
        cost_estimate=cost,
        interpret=interpret,
    )(x, w1_t, w2_t)

    return out[:, :O] if O_pad != O else out


# --------------------------------------------------------------------------
# Demo / correctness check
# --------------------------------------------------------------------------
if __name__ == "__main__":
    # Shapes implied by the module: x (batch, in_dim); fc1 (hidden, in_dim);
    # fc2 (out, hidden).  Small synthetic sizes:
    batch, in_dim, hidden_dim, out_dim = 8, 32, 64, 16

    key = jax.random.PRNGKey(0)
    kx, k1, k2 = jax.random.split(key, 3)

    x = jax.random.normal(kx, (batch, in_dim), dtype=jnp.float32)
    # Deterministic synthetic parameters (PyTorch weight layout: (out, in)).
    w1 = jax.random.normal(k1, (hidden_dim, in_dim), dtype=jnp.float32) * 0.1
    w2 = jax.random.normal(k2, (out_dim, hidden_dim), dtype=jnp.float32) * 0.1

    params = prep_mlp_params(w1, w2)          # one-time weight prep
    out = jax.block_until_ready(mlp_forward(x, params))
    assert out.shape == (batch, out_dim)

    # Reference with matching bf16-matmul / f32-accumulate semantics.
    xb = x.astype(jnp.bfloat16)
    w1b = w1.T.astype(jnp.bfloat16)
    w2b = w2.T.astype(jnp.bfloat16)
    h_ref = jnp.maximum(
        jnp.dot(xb, w1b, preferred_element_type=jnp.float32), 0.0)
    ref = jnp.dot(h_ref.astype(jnp.bfloat16), w2b,
                  preferred_element_type=jnp.float32).astype(x.dtype)
    assert jnp.allclose(out, ref, atol=1e-2, rtol=1e-2), "mismatch vs bf16 ref"

    # Loose check vs the exact f32 PyTorch-semantics reference.
    ref_f32 = jnp.maximum(x @ w1.T, 0.0) @ w2.T
    assert jnp.allclose(out, ref_f32, atol=5e-2, rtol=5e-2), "mismatch vs f32 ref"

    print("KERNEL_OK")
</pallas_src>

<mosaic_0001>
module attributes {stable_mosaic.version = 11 : i64} {
  func.func @mlp_kernel(%arg0: i32, %arg1: i32, %arg2: memref<8x32xf32, #tpu.memory_space<vmem>>, %arg3: memref<32x128xbf16, #tpu.memory_space<vmem>>, %arg4: memref<128x256xbf16, #tpu.memory_space<vmem>>, %arg5: memref<8x256xf32, #tpu.memory_space<vmem>>, %arg6: memref<8x256xf32, #tpu.memory_space<vmem>>) attributes {dimension_semantics = [#tpu.dimension_semantics<parallel>, #tpu.dimension_semantics<arbitrary>], iteration_bounds = array<i64: 1, 1>, scalar_prefetch = 0 : i64, scratch_operands = 1 : i64, tpu.core_type = #tpu.core_type<tc>, window_params = [{transform_indices = @transform_0, window_bounds = array<i64: 8, 32>}, {transform_indices = @transform_1, window_bounds = array<i64: 32, 128>}, {transform_indices = @transform_2, window_bounds = array<i64: 128, 256>}, {transform_indices = @transform_3, window_bounds = array<i64: 8, 256>}]} {
    %c0_i32 = arith.constant 0 : i32
    %0 = arith.cmpi eq, %arg1, %c0_i32 : i32
    %1 = arith.extui %0 : i1 to i32
    %c0_i32_0 = arith.constant 0 : i32
    %2 = arith.cmpi ne, %1, %c0_i32_0 : i32
    scf.if %2 {
      %cst_12 = arith.constant 0.000000e+00 : f32
      %18 = vector.broadcast %cst_12 : f32 to vector<8x256xf32>
      %c0_13 = arith.constant 0 : index
      %c0_14 = arith.constant 0 : index
      %19 = vector.load %arg6[%c0_13, %c0_14] : memref<8x256xf32, #tpu.memory_space<vmem>>, vector<8x256xf32>
      tpu.vector_store %arg6[%c0_13, %c0_14], %18 {strides = array<i32>} : memref<8x256xf32, #tpu.memory_space<vmem>>, vector<8x256xf32>,
    } else {
    }
    %c0 = arith.constant 0 : index
    %c0_1 = arith.constant 0 : index
    %3 = vector.load %arg2[%c0, %c0_1] : memref<8x32xf32, #tpu.memory_space<vmem>>, vector<8x32xf32>
    %4 = arith.truncf %3 : vector<8x32xf32> to vector<8x32xbf16>
    %c0_2 = arith.constant 0 : index
    %c0_3 = arith.constant 0 : index
    %5 = vector.load %arg3[%c0_2, %c0_3] : memref<32x128xbf16, #tpu.memory_space<vmem>>, vector<32x128xbf16>
    %cst = arith.constant dense<0.000000e+00> : vector<8x128xf32>
    %6 = tpu.matmul %4, %5, %cst {dimension_numbers = #tpu.dot_dimension_numbers<[1], [0], [0], [1], [0, 0, 1, 1], [], []>} : vector<8x32xbf16>, vector<32x128xbf16>, vector<8x128xf32> -> vector<8x128xf32>
    %7 = arith.truncf %6 : vector<8x128xf32> to vector<8x128xbf16>
    %cst_4 = arith.constant 0.000000e+00 : bf16
    %8 = vector.broadcast %cst_4 : bf16 to vector<8x128xbf16>
    %9 = arith.maximumf %7, %8 : vector<8x128xbf16>
    %c0_5 = arith.constant 0 : index
    %c0_6 = arith.constant 0 : index
    %10 = vector.load %arg4[%c0_5, %c0_6] : memref<128x256xbf16, #tpu.memory_space<vmem>>, vector<128x256xbf16>
    %cst_7 = arith.constant dense<0.000000e+00> : vector<8x256xf32>
    %11 = tpu.matmul %9, %10, %cst_7 {dimension_numbers = #tpu.dot_dimension_numbers<[1], [0], [0], [1], [0, 0, 1, 1], [], []>} : vector<8x128xbf16>, vector<128x256xbf16>, vector<8x256xf32> -> vector<8x256xf32>
    %c0_i32_8 = arith.constant 0 : i32
    %12 = arith.cmpi ne, %arg1, %c0_i32_8 : i32
    %13 = arith.extui %12 : i1 to i32
    %c0_i32_9 = arith.constant 0 : i32
    %14 = arith.cmpi ne, %13, %c0_i32_9 : i32
    scf.if %14 {
      %c0_12 = arith.constant 0 : index
      %c0_13 = arith.constant 0 : index
      %18 = vector.load %arg6[%c0_12, %c0_13] : memref<8x256xf32, #tpu.memory_space<vmem>>, vector<8x256xf32>
      %19 = arith.addf %18, %11 : vector<8x256xf32>
      %c0_14 = arith.constant 0 : index
      %c0_15 = arith.constant 0 : index
      %20 = vector.load %arg6[%c0_14, %c0_15] : memref<8x256xf32, #tpu.memory_space<vmem>>, vector<8x256xf32>
      tpu.vector_store %arg6[%c0_14, %c0_15], %19 {strides = array<i32>} : memref<8x256xf32, #tpu.memory_space<vmem>>, vector<8x256xf32>,
    } else {
    }
    %c0_i32_10 = arith.constant 0 : i32
    %15 = arith.cmpi eq, %arg1, %c0_i32_10 : i32
    %16 = arith.extui %15 : i1 to i32
    %c0_i32_11 = arith.constant 0 : i32
    %17 = arith.cmpi ne, %16, %c0_i32_11 : i32
    scf.if %17 {
      %c0_12 = arith.constant 0 : index
      %c0_13 = arith.constant 0 : index
      %18 = vector.load %arg6[%c0_12, %c0_13] : memref<8x256xf32, #tpu.memory_space<vmem>>, vector<8x256xf32>
      %19 = arith.addf %18, %11 : vector<8x256xf32>
      %c0_14 = arith.constant 0 : index
      %c0_15 = arith.constant 0 : index
      %20 = vector.load %arg5[%c0_14, %c0_15] : memref<8x256xf32, #tpu.memory_space<vmem>>, vector<8x256xf32>
      tpu.vector_store %arg5[%c0_14, %c0_15], %19 {strides = array<i32>} : memref<8x256xf32, #tpu.memory_space<vmem>>, vector<8x256xf32>,
    } else {
    }
    return
  }
  func.func @transform_0(%arg0: i32, %arg1: i32) -> (i32, i32) {
    %c0_i32 = arith.constant 0 : i32
    %c0_i32_0 = arith.constant 0 : i32
    return %arg0, %c0_i32 : i32, i32
  }
  func.func @transform_1(%arg0: i32, %arg1: i32) -> (i32, i32) {
    %c0_i32 = arith.constant 0 : i32
    %c0_i32_0 = arith.constant 0 : i32
    return %c0_i32, %arg1 : i32, i32
  }
  func.func @transform_2(%arg0: i32, %arg1: i32) -> (i32, i32) {
    %c0_i32 = arith.constant 0 : i32
    %c0_i32_0 = arith.constant 0 : i32
    return %arg1, %c0_i32 : i32, i32
  }
  func.func @transform_3(%arg0: i32, %arg1: i32) -> (i32, i32) {
    %c0_i32 = arith.constant 0 : i32
    %c0_i32_0 = arith.constant 0 : i32
    return %arg0, %c0_i32 : i32, i32
  }
}

</mosaic_0001>

<llo_original>
// kernel: tpu_custom_call.1
$region0: #{tpu_custom_call.1}
  #allocation0 [shape = 'u32[]', space=smem, size = 0x4, offset = 0x4, fixed_abs, tag = 'smem constant byte address 0x4 - core index']
  #allocation1 [shape = 'u32[144,128]{1,0:T(1,128)}', space=vmem, size = 0x12000, scoped, tag = 'internal scratch']
  #allocation2 [shape = 'f32[8,256]{1,0:T(8,128)}', space=vmem, size = 0x2000, scoped, tag = 'scratch operand']
  %s0 = inlined_call_operand.hbm [shape: f32[8,32], index: 0, kind: input, shape index: {}]
  %s1 = inlined_call_operand.hbm [shape: bf16[32,128], index: 1, kind: input, shape index: {}]
  %s2 = inlined_call_operand.hbm [shape: bf16[128,256], index: 2, kind: input, shape index: {}]
  %s3 = inlined_call_operand.hbm [shape: f32[8,256], index: 3, kind: output, shape index: {}]
  %s4 = sld [smem:[#allocation0]]
  $region46: #{tpu_custom_call.1} parent=0
    _
  %s6 = ssub.s32 1, %s4
  %s7 = scalar_select 0, %s6, %s4
  $region1: #{tpu_custom_call.1} parent=0
    #allocation3 [shape = 'u8[4096]{0}', space=vmem, size = 0x1000, scoped, tag = 'input window, operand 0, single buffered']
    #allocation4 [shape = 's32[1]{0}', space=sflag, size = 0x4, scoped, tag = 'scoped memory for tpu_custom_call.1']
    #allocation5 [shape = 's32[1]{0}', space=sflag, size = 0x4, scoped, tag = 'scoped memory for tpu_custom_call.1']
    #allocation6 [shape = 'u8[8192]{0}', space=vmem, size = 0x2000, scoped, tag = 'input window, operand 1, single buffered']
    #allocation7 [shape = 's32[1]{0}', space=sflag, size = 0x4, scoped, tag = 'scoped memory for tpu_custom_call.1']
    #allocation8 [shape = 'u8[65536]{0}', space=vmem, size = 0x10000, scoped, tag = 'input window, operand 2, single buffered']
    #allocation9 [shape = 'u8[8192]{0}', space=vmem, size = 0x2000, scoped, tag = 'output window, operand 0, single buffered']
    %8 = vsyncpa [#allocation4], 0
    %9 = vsyncpa [#allocation7], 0
    %10 = vsyncpa [#allocation5], 0
    // Predicated region
    $region2: #{tpu_custom_call.1} parent=1 // pred_check
      _
    $region3: #{tpu_custom_call.1} parent=1 // pred_check_branch
      %12 = sbr.rel (0) target = $region5
    $region4: #{tpu_custom_call.1} parent=1 // pred_region
      %s14 = ssub.s32 128, 128
      %15 = vsyncadd [#allocation4], %s14
      %s17 = sshll.u32 [#allocation3], 4
      %s18 = int_to_ptr.vmem [resolvable:$true] %s17
      %20 = dma.hbm_to_vmem [thread:$0]  %s0, 128, %s18, [#allocation4]
    $region5: #{tpu_custom_call.1} parent=1 // pred_fallthru
      _
    // Predicated region
    $region6: #{tpu_custom_call.1} parent=1 // pred_check
      _
    $region7: #{tpu_custom_call.1} parent=1 // pred_check_branch
      %22 = sbr.rel (0) target = $region9
    $region8: #{tpu_custom_call.1} parent=1 // pred_region
      %s24 = ssub.s32 256, 256
      %25 = vsyncadd [#allocation7], %s24
      %s26 = sshll.u32 [#allocation6], 4
      %s27 = int_to_ptr.vmem [resolvable:$true] %s26
      %32 = dma.hbm_to_vmem [thread:$0]  %s1, 256, %s27, [#allocation7], 64, 64, 4
    $region9: #{tpu_custom_call.1} parent=1 // pred_fallthru
      _
    // Predicated region
    $region10: #{tpu_custom_call.1} parent=1 // pred_check
      _
    $region11: #{tpu_custom_call.1} parent=1 // pred_check_branch
      %34 = sbr.rel (0) target = $region13
    $region12: #{tpu_custom_call.1} parent=1 // pred_region
      %s36 = ssub.s32 2048, 2048
      %37 = vsyncadd [#allocation7], %s36
      %s38 = sshll.u32 [#allocation8], 4
      %s39 = int_to_ptr.vmem [resolvable:$true] %s38
      %44 = dma.hbm_to_vmem [thread:$0]  %s2, 2048, %s39, [#allocation7], 128, 128, 8
    $region13: #{tpu_custom_call.1} parent=1 // pred_fallthru
      _
    // Predicated region
    $region14: #{tpu_custom_call.1} parent=1 // pred_check
      _
    $region15: #{tpu_custom_call.1} parent=1 // pred_check_branch
      %46 = sbr.rel (0) target = $region17
    $region16: #{tpu_custom_call.1} parent=1 // pred_region
      %47 = dma.done [#allocation4], 128
    $region17: #{tpu_custom_call.1} parent=1 // pred_fallthru
      _
    // Predicated region
    $region18: #{tpu_custom_call.1} parent=1 // pred_check
      _
    $region19: #{tpu_custom_call.1} parent=1 // pred_check_branch
      %49 = sbr.rel (0) target = $region21
    $region20: #{tpu_custom_call.1} parent=1 // pred_region
      %50 = dma.done [#allocation7], 256
    $region21: #{tpu_custom_call.1} parent=1 // pred_fallthru
      _
    // Predicated region
    $region22: #{tpu_custom_call.1} parent=1 // pred_check
      _
    $region23: #{tpu_custom_call.1} parent=1 // pred_check_branch
      %52 = sbr.rel (0) target = $region25
    $region24: #{tpu_custom_call.1} parent=1 // pred_region
      %53 = dma.done [#allocation7], 2048
    $region25: #{tpu_custom_call.1} parent=1 // pred_fallthru
      _
    %p55 = scmp.eq.s32.totalorder 0, 0
    // Predicated region
    $region26: #{tpu_custom_call.1} parent=1 // pred_check
      %p56 = pneg %p55
    $region27: #{tpu_custom_call.1} parent=1 // pred_check_branch
      %58 = sbr.rel (%p56) target = $region29
    $region28: #{tpu_custom_call.1} parent=1 // pred_region
      %59 = vst [vmem:[#allocation2] sm:$0xff] 0.0
      %60 = vst [vmem:[#allocation2 + $0x8] sm:$0xff] 0.0
    $region29: #{tpu_custom_call.1} parent=1 // pred_fallthru
      _
    %v61 = vld [vmem:[#allocation3] sm:$0xff]
    %v62 = vpack.c.bf16 %v61, %v61
    %v63 = vld [vmem:[#allocation6] sm:$0xf]
    %v64 = vld [vmem:[#allocation6 + $0x4] sm:$0xf]
    %v65 = vld [vmem:[#allocation6 + $0x8] sm:$0xf]
    %v66 = vld [vmem:[#allocation6 + $0xc] sm:$0xf]
    %v71 = vunpack.c.l.b16 %v63
    %v72 = vunpack.c.l.b16 %v64
    %v73 = vunpack.c.l.b16 %v65
    %v74 = vunpack.c.l.b16 %v66
    %v75 = vpack.c.b16 %v72, %v71
    %v76 = vpack.c.b16 %v74, %v73
    %vm79 = vcmask 261120
    %v81 = vsel %vm79, %v62, 0
    %83 = vmatprep.subr.bf16.mxu0 0
    %84 = vmatpush1.bf16.msra.mxu0 %v75
    %85 = vmatprep.subr.bf16.mxu0 0
    %86 = vmatpush1.bf16.msra.mxu0 %v76
    %87 = vmatprep.subr.bf16.mxu0 0
    %88 = vmatpush1.bf16.msra.mxu0 0
    %89 = vmatprep.subr.bf16.mxu0 0
    %90 = vmatpush1.bf16.msra.mxu0 0
    %91 = vmatprep.subr.bf16.mxu0 0
    %92 = vmatpush1.bf16.msra.mxu0 0
    %93 = vmatprep.subr.bf16.mxu0 0
    %94 = vmatpush1.bf16.msra.mxu0 0
    %95 = vmatprep.subr.bf16.mxu0 0
    %96 = vmatpush1.bf16.msra.mxu0 0
    %97 = vmatprep.subr.bf16.mxu0 0
    %98 = vmatpush1.bf16.msra.mxu0 0
    %99 = vmatprep.subr.bf16.mxu0 0
    %100 = vmatpush1.bf16.msra.mxu0 0
    %101 = vmatprep.subr.bf16.mxu0 0
    %102 = vmatpush1.bf16.msra.mxu0 0
    %103 = vmatprep.subr.bf16.mxu0 0
    %104 = vmatpush1.bf16.msra.mxu0 0
    %105 = vmatprep.subr.bf16.mxu0 0
    %106 = vmatpush1.bf16.msra.mxu0 0
    %107 = vmatprep.subr.bf16.mxu0 0
    %108 = vmatpush1.bf16.msra.mxu0 0
    %109 = vmatprep.subr.bf16.mxu0 0
    %110 = vmatpush1.bf16.msra.mxu0 0
    %111 = vmatprep.subr.bf16.mxu0 0
    %112 = vmatpush1.bf16.msra.mxu0 0
    %113 = vmatprep.subr.bf16.mxu0 0
    %114 = vmatpush1.bf16.msra.mxu0 0
    %115 = vmatprep.mubr.bf16.mxu0 0
    %116 = vmatmul.mubr.bf16.gmra.mrb[0].mxu0 %v81
    %v117 = vpop.f32.mrb[0].mxu0
    %v118 = vadd.f32 0.0, %v117
    %v119 = vpop.f32.mrb[0].mxu0
    %v120 = vpop.f32.mrb[0].mxu0
    %v121 = vpop.f32.mrb[0].mxu0
    %122 = vdwg.mxu0
    %v123 = vpack.c.bf16 %v118, %v118
    %v124 = vmax.bf16 %v123, 0
    %v125 = vld [vmem:[#allocation8] sm:$0xff]
    %v126 = vld [vmem:[#allocation8 + $0x8] sm:$0xff]
    %v127 = vld [vmem:[#allocation8 + $0x10] sm:$0xff]
    %v128 = vld [vmem:[#allocation8 + $0x18] sm:$0xff]
    %v129 = vld [vmem:[#allocation8 + $0x20] sm:$0xff]
    %v130 = vld [vmem:[#allocation8 + $0x28] sm:$0xff]
    %v131 = vld [vmem:[#allocation8 + $0x30] sm:$0xff]
    %v132 = vld [vmem:[#allocation8 + $0x38] sm:$0xff]
    %v133 = vld [vmem:[#allocation8 + $0x40] sm:$0xff]
    %v134 = vld [vmem:[#allocation8 + $0x48] sm:$0xff]
    %v135 = vld [vmem:[#allocation8 + $0x50] sm:$0xff]
    %v136 = vld [vmem:[#allocation8 + $0x58] sm:$0xff]
    %v137 = vld [vmem:[#allocation8 + $0x60] sm:$0xff]
    %v138 = vld [vmem:[#allocation8 + $0x68] sm:$0xff]
    %v139 = vld [vmem:[#allocation8 + $0x70] sm:$0xff]
    %v140 = vld [vmem:[#allocation8 + $0x78] sm:$0xff]
    %v157 = vunpack.c.l.b16 %v125
    %v158 = vunpack.c.h.b16 %v125
    %v159 = vunpack.c.l.b16 %v126
    %v160 = vunpack.c.h.b16 %v126
    %v161 = vunpack.c.l.b16 %v127
    %v162 = vunpack.c.h.b16 %v127
    %v163 = vunpack.c.l.b16 %v128
    %v164 = vunpack.c.h.b16 %v128
    %v165 = vunpack.c.l.b16 %v129
    %v166 = vunpack.c.h.b16 %v129
    %v167 = vunpack.c.l.b16 %v130
    %v168 = vunpack.c.h.b16 %v130
    %v169 = vunpack.c.l.b16 %v131
    %v170 = vunpack.c.h.b16 %v131
    %v171 = vunpack.c.l.b16 %v132
    %v172 = vunpack.c.h.b16 %v132
    %v173 = vunpack.c.l.b16 %v133
    %v174 = vunpack.c.h.b16 %v133
    %v175 = vunpack.c.l.b16 %v134
    %v176 = vunpack.c.h.b16 %v134
    %v177 = vunpack.c.l.b16 %v135
    %v178 = vunpack.c.h.b16 %v135
    %v179 = vunpack.c.l.b16 %v136
    %v180 = vunpack.c.h.b16 %v136
    %v181 = vunpack.c.l.b16 %v137
    %v182 = vunpack.c.h.b16 %v137
    %v183 = vunpack.c.l.b16 %v138
    %v184 = vunpack.c.h.b16 %v138
    %v185 = vunpack.c.l.b16 %v139
    %v186 = vunpack.c.h.b16 %v139
    %v187 = vunpack.c.l.b16 %v140
    %v188 = vunpack.c.h.b16 %v140
    %v189 = vpack.c.b16 %v159, %v157
    %v190 = vpack.c.b16 %v160, %v158
    %v191 = vpack.c.b16 %v163, %v161
    %v192 = vpack.c.b16 %v164, %v162
    %v193 = vpack.c.b16 %v167, %v165
    %v194 = vpack.c.b16 %v168, %v166
    %v195 = vpack.c.b16 %v171, %v169
    %v196 = vpack.c.b16 %v172, %v170
    %v197 = vpack.c.b16 %v175, %v173
    %v198 = vpack.c.b16 %v176, %v174
    %v199 = vpack.c.b16 %v179, %v177
    %v200 = vpack.c.b16 %v180, %v178
    %v201 = vpack.c.b16 %v183, %v181
    %v202 = vpack.c.b16 %v184, %v182
    %v203 = vpack.c.b16 %v187, %v185
    %v204 = vpack.c.b16 %v188, %v186
    %221 = vmatprep.subr.bf16.mxu0 %v190
    %222 = vmatpush1.bf16.msra.mxu0 %v189
    %223 = vmatprep.subr.bf16.mxu0 %v192
    %224 = vmatpush1.bf16.msra.mxu0 %v191
    %225 = vmatprep.subr.bf16.mxu0 %v194
    %226 = vmatpush1.bf16.msra.mxu0 %v193
    %227 = vmatprep.subr.bf16.mxu0 %v196
    %228 = vmatpush1.bf16.msra.mxu0 %v195
    %229 = vmatprep.subr.bf16.mxu0 %v198
    %230 = vmatpush1.bf16.msra.mxu0 %v197
    %231 = vmatprep.subr.bf16.mxu0 %v200
    %232 = vmatpush1.bf16.msra.mxu0 %v199
    %233 = vmatprep.subr.bf16.mxu0 %v202
    %234 = vmatpush1.bf16.msra.mxu0 %v201
    %235 = vmatprep.subr.bf16.mxu0 %v204
    %236 = vmatpush1.bf16.msra.mxu0 %v203
    %237 = vmatprep.subr.bf16.mxu0 0
    %238 = vmatpush1.bf16.msra.mxu0 0
    %239 = vmatprep.subr.bf16.mxu0 0
    %240 = vmatpush1.bf16.msra.mxu0 0
    %241 = vmatprep.subr.bf16.mxu0 0
    %242 = vmatpush1.bf16.msra.mxu0 0
    %243 = vmatprep.subr.bf16.mxu0 0
    %244 = vmatpush1.bf16.msra.mxu0 0
    %245 = vmatprep.subr.bf16.mxu0 0
    %246 = vmatpush1.bf16.msra.mxu0 0
    %247 = vmatprep.subr.bf16.mxu0 0
    %248 = vmatpush1.bf16.msra.mxu0 0
    %249 = vmatprep.subr.bf16.mxu0 0
    %250 = vmatpush1.bf16.msra.mxu0 0
    %251 = vmatprep.subr.bf16.mxu0 0
    %252 = vmatpush1.bf16.msra.mxu0 0
    %253 = vmatprep.mubr.bf16.mxu0 0
    %254 = vmatmul.mubr.bf16.gmra.mrb[0].mxu0 %v124
    %v255 = vpop.f32.mrb[0].mxu0
    %v256 = vadd.f32 0.0, %v255
    %v257 = vpop.f32.mrb[0].mxu0
    %v258 = vadd.f32 0.0, %v257
    %v259 = vpop.f32.mrb[0].mxu0
    %v260 = vpop.f32.mrb[0].mxu0
    %261 = vdwg.mxu0
    %p262 = scmp.ne.s32.totalorder 0, 0
    // Predicated region
    $region30: #{tpu_custom_call.1} parent=1 // pred_check
      %p263 = pneg %p262
    $region31: #{tpu_custom_call.1} parent=1 // pred_check_branch
      %265 = sbr.rel (%p263) target = $region33
    $region32: #{tpu_custom_call.1} parent=1 // pred_region
      %v266 = vld [vmem:[#allocation2] sm:$0xff]
      %v267 = vld [vmem:[#allocation2 + $0x8] sm:$0xff]
      %v268 = vadd.f32 %v266, %v256
      %v269 = vadd.f32 %v267, %v258
      %270 = vst [vmem:[#allocation2] sm:$0xff] %v268
      %271 = vst [vmem:[#allocation2 + $0x8] sm:$0xff] %v269
    $region33: #{tpu_custom_call.1} parent=1 // pred_fallthru
      _
    // Predicated region
    $region34: #{tpu_custom_call.1} parent=1 // pred_check
      %p272 = pneg %p55
    $region35: #{tpu_custom_call.1} parent=1 // pred_check_branch
      %274 = sbr.rel (%p272) target = $region37
    $region36: #{tpu_custom_call.1} parent=1 // pred_region
      %v275 = vld [vmem:[#allocation2] sm:$0xff]
      %v276 = vld [vmem:[#allocation2 + $0x8] sm:$0xff]
      %v277 = vadd.f32 %v275, %v256
      %v278 = vadd.f32 %v276, %v258
      %279 = vst [vmem:[#allocation9] sm:$0xff] %v277
      %280 = vst [vmem:[#allocation9 + $0x8] sm:$0xff] %v278
    $region37: #{tpu_custom_call.1} parent=1 // pred_fallthru
      _
    // Predicated region
    $region38: #{tpu_custom_call.1} parent=1 // pred_check
      _
    $region39: #{tpu_custom_call.1} parent=1 // pred_check_branch
      %282 = sbr.rel (0) target = $region41
    $region40: #{tpu_custom_call.1} parent=1 // pred_region
      %s284 = ssub.s32 256, 256
      %285 = vsyncadd [#allocation5], %s284
      %s287 = sshll.u32 [#allocation9], 4
      %s288 = int_to_ptr.vmem [resolvable:$true] %s287
      %290 = dma.vmem_to_hbm [thread:$0]  %s288, 256, %s3, [#allocation5]
    $region41: #{tpu_custom_call.1} parent=1 // pred_fallthru
      _
    // Predicated region
    $region42: #{tpu_custom_call.1} parent=1 // pred_check
      _
    $region43: #{tpu_custom_call.1} parent=1 // pred_check_branch
      %292 = sbr.rel (0) target = $region45
    $region44: #{tpu_custom_call.1} parent=1 // pred_region
      %293 = dma.done [#allocation5], 256
    $region45: #{tpu_custom_call.1} parent=1 // pred_fallthru
      _
    %294 = vsyncpa [#allocation4], 1
    %295 = vsyncpa [#allocation7], 1
    %296 = vsyncpa [#allocation5], 1

</llo_original>
